<compile_context>
chip_gen: v6e
topology: v6e:2x2x1
jax: 0.10.0
libtpu: 0.0.40
codegen_flags: <defaults>
</compile_context>

<pallas_src>
import jax
import jax.numpy as jnp
from jax.experimental import pallas as pl
from jax.experimental.pallas import tpu as pltpu

LANE = 128
LEAKY_SLOPE = 0.2


def _round_up(x, m):
    return ((x + m - 1) // m) * m


def _pad2(a, rows, cols):
    return jnp.pad(a, ((0, rows - a.shape[0]), (0, cols - a.shape[1])))


def _choose_tb(B, batch_tile):
    """Batch tile: multiple of 16, as large as possible, but >= 2 grid steps when B allows
    (so v7x's two TensorCores both get work via the 'parallel' batch axis)."""
    tb = max(16, min(_round_up(B, 16), _round_up(batch_tile, 16)))
    if B >= 32 and -(-B // tb) < 2:
        tb = _round_up(-(-B // 2), 16)
    return tb


def discriminator_fc_kernel(x_ref, z_ref,
                            w1_ref, b1_ref,
                            w2a_ref, w2b_ref, b2_ref,
                            w3_ref, b3_ref,
                            w4_ref, b4_ref,
                            o_ref):
    mxu_dt = w1_ref.dtype  # bf16 (default fast path) or f32; accumulation is always f32

    def leaky(t):
        # LeakyReLU(0.2): single VPU max
        return jnp.maximum(t, LEAKY_SLOPE * t)

    # Cast activations to the MXU dtype in-kernel (avoids an extra HBM pass in the wrapper).
    x = x_ref[...].astype(mxu_dt)        # (TB, X_dim)  native width
    z = z_ref[...].astype(mxu_dt)        # (TB, z_dim)  native width

    # ---- fc1: LeakyReLU(x @ W1 + b1)          (TB, X_dim) @ (X_dim, Zp) ----
    h = jnp.dot(x, w1_ref[...], preferred_element_type=jnp.float32)
    h = leaky(h + b1_ref[...])           # (TB, Zp) f32; padded cols are exactly 0

    # ---- fc[0]: LeakyReLU(cat([h, z]) @ W2 + b2) == h @ W2a + z @ W2b + b2 ----
    g = jnp.dot(h.astype(mxu_dt), w2a_ref[...], preferred_element_type=jnp.float32)
    g = g + jnp.dot(z, w2b_ref[...], preferred_element_type=jnp.float32)
    g = leaky(g + b2_ref[...])           # (TB, Hp) f32

    # ---- fc[2]: LeakyReLU(g @ W3 + b3)        (TB, Hp) @ (Hp, Hp) ----
    g = jnp.dot(g.astype(mxu_dt), w3_ref[...], preferred_element_type=jnp.float32)
    g = leaky(g + b3_ref[...])           # (TB, Hp) f32

    # ---- fc[4]: Sigmoid(g @ W4 + b4) -> single logit per row.
    # VPU mul + lane reduce against the (1, Hp) weight row; padded cols contribute 0.
    y = jnp.sum(g * w4_ref[...], axis=-1, keepdims=True) + b4_ref[...]   # (TB, 1)
    # sigmoid(x) = 0.5 * (tanh(x/2) + 1)  -> EUP tanh, keeps VPU slots free
    o_ref[...] = (0.5 * (jnp.tanh(0.5 * y) + 1.0)).astype(o_ref.dtype)


def prepare_params(params, *, use_bf16=True):
    """One-time weight prep: pad feature dims to lane multiples, cast matmul weights to the
    MXU dtype. Call once and reuse across forward calls. Zero-padding is exact (padded
    rows/cols contribute nothing)."""
    X_dim, z_dim = params["w1"].shape
    h_dim = params["w2"].shape[1]
    assert params["w2"].shape[0] == 2 * z_dim
    Zp = _round_up(z_dim, LANE)
    Hp = _round_up(h_dim, LANE)
    mxu_dt = jnp.bfloat16 if use_bf16 else jnp.float32
    w2 = params["w2"]
    return {
        "w1": _pad2(params["w1"], X_dim, Zp).astype(mxu_dt),
        "b1": _pad2(params["b1"].reshape(1, -1), 1, Zp).astype(jnp.float32),
        "w2a": _pad2(w2[:z_dim], Zp, Hp).astype(mxu_dt),          # fc1(x) half of the concat
        "w2b": _pad2(w2[z_dim:], z_dim, Hp).astype(mxu_dt),       # input_z half of the concat
        "b2": _pad2(params["b2"].reshape(1, -1), 1, Hp).astype(jnp.float32),
        "w3": _pad2(params["w3"], Hp, Hp).astype(mxu_dt),
        "b3": _pad2(params["b3"].reshape(1, -1), 1, Hp).astype(jnp.float32),
        "w4row": _pad2(params["w4"].reshape(1, -1), 1, Hp).astype(jnp.float32),  # head as a row
        "b4": params["b4"].reshape(1, 1).astype(jnp.float32),
    }


def discriminator_fc(input_x, input_z, prepped, *, batch_tile=1024):
    """input_x: (B, X_dim) f32, input_z: (B, z_dim) f32, prepped: prepare_params(...).
    Returns (B, 1) f32."""
    B, X_dim = input_x.shape
    z_dim = input_z.shape[1]
    Zp = prepped["w1"].shape[1]
    Hp = prepped["w3"].shape[1]
    assert prepped["w1"].shape[0] == X_dim
    assert prepped["w2b"].shape[0] == z_dim

    TB = _choose_tb(B, batch_tile)
    B_pad = _round_up(B, TB)
    # Row-pad only when needed (no lane padding, no dtype cast of the batch in the wrapper).
    xp = input_x if B_pad == B else jnp.pad(input_x, ((0, B_pad - B), (0, 0)))
    zp = input_z if B_pad == B else jnp.pad(input_z, ((0, B_pad - B), (0, 0)))

    w_args = (prepped["w1"], prepped["b1"],
              prepped["w2a"], prepped["w2b"], prepped["b2"],
              prepped["w3"], prepped["b3"],
              prepped["w4row"], prepped["b4"])

    full = lambda a: pl.BlockSpec(a.shape, lambda i: (0, 0))   # VMEM-resident across steps

    w_bytes = sum(int(a.size) * a.dtype.itemsize for a in w_args)
    flops = 2 * B_pad * (X_dim * Zp + Zp * Hp + z_dim * Hp + Hp * Hp + Hp)
    bytes_accessed = int(xp.size * xp.dtype.itemsize + zp.size * zp.dtype.itemsize
                         + w_bytes + B_pad * 4)

    # VMEM budget from actual block sizes (double-buffered activations + weights + temps),
    # clamped to stay well inside v7x's 64 MiB per-TC VMEM.
    blk_bytes = TB * (X_dim + z_dim + 1) * 4
    temps = 8 * TB * max(Zp, Hp) * 4
    vmem_limit = int(min(max(2 * (2 * blk_bytes + 2 * w_bytes + temps), 16 << 20), 48 << 20))

    out = pl.pallas_call(
        discriminator_fc_kernel,
        out_shape=jax.ShapeDtypeStruct((B_pad, 1), jnp.float32),
        grid_spec=pltpu.PrefetchScalarGridSpec(
            num_scalar_prefetch=0,
            grid=(B_pad // TB,),
            in_specs=[
                pl.BlockSpec((TB, X_dim), lambda i: (i, 0)),   # native width, full last dim
                pl.BlockSpec((TB, z_dim), lambda i: (i, 0)),   # native width, full last dim
                *[full(a) for a in w_args],
            ],
            out_specs=pl.BlockSpec((TB, 1), lambda i: (i, 0)),
        ),
        compiler_params=pltpu.CompilerParams(
            dimension_semantics=("parallel",),   # rows independent -> megacore / dual-TC OK
            vmem_limit_bytes=vmem_limit,
        ),
        cost_estimate=pl.CostEstimate(
            flops=flops,
            transcendentals=B_pad,
            bytes_accessed=bytes_accessed,
        ),
    )(xp, zp, *w_args)

    return out[:B]


def init_params(key, z_dim, h_dim, X_dim):
    """Mimics utils.initialize_weights: Linear weight ~ N(0, 0.02), bias = 0.
       Weights stored (in_features, out_features) so forward is x @ W + b."""
    k1, k2, k3, k4 = jax.random.split(key, 4)
    return {
        "w1": 0.02 * jax.random.normal(k1, (X_dim, z_dim), jnp.float32),
        "b1": jnp.zeros((1, z_dim), jnp.float32),
        "w2": 0.02 * jax.random.normal(k2, (2 * z_dim, h_dim), jnp.float32),
        "b2": jnp.zeros((1, h_dim), jnp.float32),
        "w3": 0.02 * jax.random.normal(k3, (h_dim, h_dim), jnp.float32),
        "b3": jnp.zeros((1, h_dim), jnp.float32),
        "w4": 0.02 * jax.random.normal(k4, (h_dim, 1), jnp.float32),
        "b4": jnp.zeros((1, 1), jnp.float32),
    }


def discriminator_fc_ref(input_x, input_z, p):
    """Pure-JAX reference for correctness checking."""
    leaky = lambda t: jnp.where(t > 0, t, LEAKY_SLOPE * t)
    h = leaky(input_x @ p["w1"] + p["b1"])
    c = jnp.concatenate([h, input_z], axis=1)
    g = leaky(c @ p["w2"] + p["b2"])
    g = leaky(g @ p["w3"] + p["b3"])
    return jax.nn.sigmoid(g @ p["w4"] + p["b4"])


if __name__ == "__main__":
    key = jax.random.PRNGKey(0)
    k_param, k_x, k_z = jax.random.split(key, 3)

    B, z_dim, h_dim, X_dim = 8, 16, 32, 64
    params = init_params(k_param, z_dim, h_dim, X_dim)
    x = jax.random.normal(k_x, (B, X_dim), jnp.float32)
    z = jax.random.normal(k_z, (B, z_dim), jnp.float32)

    ref = discriminator_fc_ref(x, z, params)

    # f32 MXU-operand path: strict check against reference.
    out_f32 = jax.block_until_ready(
        discriminator_fc(x, z, prepare_params(params, use_bf16=False)))
    assert out_f32.shape == (B, 1)
    assert jnp.allclose(out_f32, ref, atol=1e-5, rtol=1e-5), "f32 mismatch vs reference"

    # bf16 MXU-operand path (fast path on v5e/v6e/v7x): relaxed tolerance
    # (inter-layer activations are re-quantized to bf16 between matmuls by design).
    out_bf16 = jax.block_until_ready(
        discriminator_fc(x, z, prepare_params(params, use_bf16=True)))
    assert out_bf16.shape == (B, 1)
    assert jnp.allclose(out_bf16, ref, atol=2e-2, rtol=2e-2), "bf16 mismatch vs reference"

    print("KERNEL_OK")
</pallas_src>

<mosaic_0001>
module attributes {stable_mosaic.version = 11 : i64} {
  func.func @discriminator_fc_kernel(%arg0: i32, %arg1: memref<16x64xf32, #tpu.memory_space<vmem>>, %arg2: memref<16x16xf32, #tpu.memory_space<vmem>>, %arg3: memref<64x128xf32, #tpu.memory_space<vmem>>, %arg4: memref<1x128xf32, #tpu.memory_space<vmem>>, %arg5: memref<128x128xf32, #tpu.memory_space<vmem>>, %arg6: memref<16x128xf32, #tpu.memory_space<vmem>>, %arg7: memref<1x128xf32, #tpu.memory_space<vmem>>, %arg8: memref<128x128xf32, #tpu.memory_space<vmem>>, %arg9: memref<1x128xf32, #tpu.memory_space<vmem>>, %arg10: memref<1x128xf32, #tpu.memory_space<vmem>>, %arg11: memref<1x1xf32, #tpu.memory_space<vmem>>, %arg12: memref<16x1xf32, #tpu.memory_space<vmem>>) attributes {dimension_semantics = [#tpu.dimension_semantics<parallel>], iteration_bounds = array<i64: 1>, scalar_prefetch = 0 : i64, scratch_operands = 0 : i64, tpu.core_type = #tpu.core_type<tc>, window_params = [{transform_indices = @transform_0, window_bounds = array<i64: 16, 64>}, {transform_indices = @transform_1, window_bounds = array<i64: 16, 16>}, {pipeline_mode = #tpu.pipeline_mode<synchronous>, transform_indices = @transform_2, window_bounds = array<i64: 64, 128>}, {pipeline_mode = #tpu.pipeline_mode<synchronous>, transform_indices = @transform_3, window_bounds = array<i64: 1, 128>}, {pipeline_mode = #tpu.pipeline_mode<synchronous>, transform_indices = @transform_4, window_bounds = array<i64: 128, 128>}, {pipeline_mode = #tpu.pipeline_mode<synchronous>, transform_indices = @transform_5, window_bounds = array<i64: 16, 128>}, {pipeline_mode = #tpu.pipeline_mode<synchronous>, transform_indices = @transform_6, window_bounds = array<i64: 1, 128>}, {pipeline_mode = #tpu.pipeline_mode<synchronous>, transform_indices = @transform_7, window_bounds = array<i64: 128, 128>}, {pipeline_mode = #tpu.pipeline_mode<synchronous>, transform_indices = @transform_8, window_bounds = array<i64: 1, 128>}, {pipeline_mode = #tpu.pipeline_mode<synchronous>, transform_indices = @transform_9, window_bounds = array<i64: 1, 128>}, {pipeline_mode = #tpu.pipeline_mode<synchronous>, transform_indices = @transform_10, window_bounds = array<i64: 1, 1>}, {transform_indices = @transform_11, window_bounds = array<i64: 16, 1>}]} {
    %c0 = arith.constant 0 : index
    %c0_0 = arith.constant 0 : index
    %0 = vector.load %arg1[%c0, %c0_0] : memref<16x64xf32, #tpu.memory_space<vmem>>, vector<16x64xf32>
    %c0_1 = arith.constant 0 : index
    %c0_2 = arith.constant 0 : index
    %1 = vector.load %arg2[%c0_1, %c0_2] : memref<16x16xf32, #tpu.memory_space<vmem>>, vector<16x16xf32>
    %c0_3 = arith.constant 0 : index
    %c0_4 = arith.constant 0 : index
    %2 = vector.load %arg3[%c0_3, %c0_4] : memref<64x128xf32, #tpu.memory_space<vmem>>, vector<64x128xf32>
    %cst = arith.constant dense<0.000000e+00> : vector<16x128xf32>
    %3 = tpu.matmul %0, %2, %cst {dimension_numbers = #tpu.dot_dimension_numbers<[1], [0], [0], [1], [0, 0, 1, 1], [], []>} : vector<16x64xf32>, vector<64x128xf32>, vector<16x128xf32> -> vector<16x128xf32>
    %c0_5 = arith.constant 0 : index
    %c0_6 = arith.constant 0 : index
    %4 = vector.load %arg4[%c0_5, %c0_6] : memref<1x128xf32, #tpu.memory_space<vmem>>, vector<1x128xf32>
    %5 = vector.broadcast %4 : vector<1x128xf32> to vector<16x128xf32>
    %6 = arith.addf %3, %5 : vector<16x128xf32>
    %cst_7 = arith.constant 2.000000e-01 : f32
    %7 = vector.broadcast %cst_7 : f32 to vector<16x128xf32>
    %8 = arith.mulf %7, %6 : vector<16x128xf32>
    %9 = arith.maximumf %6, %8 : vector<16x128xf32>
    %c0_8 = arith.constant 0 : index
    %c0_9 = arith.constant 0 : index
    %10 = vector.load %arg5[%c0_8, %c0_9] : memref<128x128xf32, #tpu.memory_space<vmem>>, vector<128x128xf32>
    %cst_10 = arith.constant dense<0.000000e+00> : vector<16x128xf32>
    %11 = tpu.matmul %9, %10, %cst_10 {dimension_numbers = #tpu.dot_dimension_numbers<[1], [0], [0], [1], [0, 0, 1, 1], [], []>} : vector<16x128xf32>, vector<128x128xf32>, vector<16x128xf32> -> vector<16x128xf32>
    %c0_11 = arith.constant 0 : index
    %c0_12 = arith.constant 0 : index
    %12 = vector.load %arg6[%c0_11, %c0_12] : memref<16x128xf32, #tpu.memory_space<vmem>>, vector<16x128xf32>
    %cst_13 = arith.constant dense<0.000000e+00> : vector<16x128xf32>
    %13 = tpu.matmul %1, %12, %cst_13 {dimension_numbers = #tpu.dot_dimension_numbers<[1], [0], [0], [1], [0, 0, 1, 1], [], []>} : vector<16x16xf32>, vector<16x128xf32>, vector<16x128xf32> -> vector<16x128xf32>
    %14 = arith.addf %11, %13 : vector<16x128xf32>
    %c0_14 = arith.constant 0 : index
    %c0_15 = arith.constant 0 : index
    %15 = vector.load %arg7[%c0_14, %c0_15] : memref<1x128xf32, #tpu.memory_space<vmem>>, vector<1x128xf32>
    %16 = vector.broadcast %15 : vector<1x128xf32> to vector<16x128xf32>
    %17 = arith.addf %14, %16 : vector<16x128xf32>
    %cst_16 = arith.constant 2.000000e-01 : f32
    %18 = vector.broadcast %cst_16 : f32 to vector<16x128xf32>
    %19 = arith.mulf %18, %17 : vector<16x128xf32>
    %20 = arith.maximumf %17, %19 : vector<16x128xf32>
    %c0_17 = arith.constant 0 : index
    %c0_18 = arith.constant 0 : index
    %21 = vector.load %arg8[%c0_17, %c0_18] : memref<128x128xf32, #tpu.memory_space<vmem>>, vector<128x128xf32>
    %cst_19 = arith.constant dense<0.000000e+00> : vector<16x128xf32>
    %22 = tpu.matmul %20, %21, %cst_19 {dimension_numbers = #tpu.dot_dimension_numbers<[1], [0], [0], [1], [0, 0, 1, 1], [], []>} : vector<16x128xf32>, vector<128x128xf32>, vector<16x128xf32> -> vector<16x128xf32>
    %c0_20 = arith.constant 0 : index
    %c0_21 = arith.constant 0 : index
    %23 = vector.load %arg9[%c0_20, %c0_21] : memref<1x128xf32, #tpu.memory_space<vmem>>, vector<1x128xf32>
    %24 = vector.broadcast %23 : vector<1x128xf32> to vector<16x128xf32>
    %25 = arith.addf %22, %24 : vector<16x128xf32>
    %cst_22 = arith.constant 2.000000e-01 : f32
    %26 = vector.broadcast %cst_22 : f32 to vector<16x128xf32>
    %27 = arith.mulf %26, %25 : vector<16x128xf32>
    %28 = arith.maximumf %25, %27 : vector<16x128xf32>
    %c0_23 = arith.constant 0 : index
    %c0_24 = arith.constant 0 : index
    %29 = vector.load %arg10[%c0_23, %c0_24] : memref<1x128xf32, #tpu.memory_space<vmem>>, vector<1x128xf32>
    %30 = vector.broadcast %29 : vector<1x128xf32> to vector<16x128xf32>
    %31 = arith.mulf %28, %30 : vector<16x128xf32>
    %cst_25 = arith.constant dense<0.000000e+00> : vector<16xf32>
    %32 = vector.multi_reduction <add>, %31, %cst_25 [1] : vector<16x128xf32> to vector<16xf32>
    %33 = vector.shape_cast %32 : vector<16xf32> to vector<16x1xf32>
    %c0_26 = arith.constant 0 : index
    %c0_27 = arith.constant 0 : index
    %34 = vector.load %arg11[%c0_26, %c0_27] : memref<1x1xf32, #tpu.memory_space<vmem>>, vector<1x1xf32>
    %35 = vector.broadcast %34 : vector<1x1xf32> to vector<16x1xf32>
    %36 = arith.addf %33, %35 : vector<16x1xf32>
    %cst_28 = arith.constant 5.000000e-01 : f32
    %37 = vector.broadcast %cst_28 : f32 to vector<16x1xf32>
    %38 = arith.mulf %37, %36 : vector<16x1xf32>
    %39 = math.tanh %38 : vector<16x1xf32>
    %cst_29 = arith.constant 1.000000e+00 : f32
    %40 = vector.broadcast %cst_29 : f32 to vector<16x1xf32>
    %41 = arith.addf %39, %40 : vector<16x1xf32>
    %cst_30 = arith.constant 5.000000e-01 : f32
    %42 = vector.broadcast %cst_30 : f32 to vector<16x1xf32>
    %43 = arith.mulf %42, %41 : vector<16x1xf32>
    %c0_31 = arith.constant 0 : index
    %c0_32 = arith.constant 0 : index
    %44 = vector.load %arg12[%c0_31, %c0_32] : memref<16x1xf32, #tpu.memory_space<vmem>>, vector<16x1xf32>
    tpu.vector_store %arg12[%c0_31, %c0_32], %43 {strides = array<i32>} : memref<16x1xf32, #tpu.memory_space<vmem>>, vector<16x1xf32>,
    return
  }
  func.func @transform_0(%arg0: i32) -> (i32, i32) {
    %c0_i32 = arith.constant 0 : i32
    %c0_i32_0 = arith.constant 0 : i32
    return %arg0, %c0_i32 : i32, i32
  }
  func.func @transform_1(%arg0: i32) -> (i32, i32) {
    %c0_i32 = arith.constant 0 : i32
    %c0_i32_0 = arith.constant 0 : i32
    return %arg0, %c0_i32 : i32, i32
  }
  func.func @transform_2(%arg0: i32) -> (i32, i32) {
    %c0_i32 = arith.constant 0 : i32
    %c0_i32_0 = arith.constant 0 : i32
    %c0_i32_1 = arith.constant 0 : i32
    return %c0_i32, %c0_i32_0 : i32, i32
  }
  func.func @transform_3(%arg0: i32) -> (i32, i32) {
    %c0_i32 = arith.constant 0 : i32
    %c0_i32_0 = arith.constant 0 : i32
    %c0_i32_1 = arith.constant 0 : i32
    return %c0_i32, %c0_i32_0 : i32, i32
  }
  func.func @transform_4(%arg0: i32) -> (i32, i32) {
    %c0_i32 = arith.constant 0 : i32
    %c0_i32_0 = arith.constant 0 : i32
    %c0_i32_1 = arith.constant 0 : i32
    return %c0_i32, %c0_i32_0 : i32, i32
  }
  func.func @transform_5(%arg0: i32) -> (i32, i32) {
    %c0_i32 = arith.constant 0 : i32
    %c0_i32_0 = arith.constant 0 : i32
    %c0_i32_1 = arith.constant 0 : i32
    return %c0_i32, %c0_i32_0 : i32, i32
  }
  func.func @transform_6(%arg0: i32) -> (i32, i32) {
    %c0_i32 = arith.constant 0 : i32
    %c0_i32_0 = arith.constant 0 : i32
    %c0_i32_1 = arith.constant 0 : i32
    return %c0_i32, %c0_i32_0 : i32, i32
  }
  func.func @transform_7(%arg0: i32) -> (i32, i32) {
    %c0_i32 = arith.constant 0 : i32
    %c0_i32_0 = arith.constant 0 : i32
    %c0_i32_1 = arith.constant 0 : i32
    return %c0_i32, %c0_i32_0 : i32, i32
  }
  func.func @transform_8(%arg0: i32) -> (i32, i32) {
    %c0_i32 = arith.constant 0 : i32
    %c0_i32_0 = arith.constant 0 : i32
    %c0_i32_1 = arith.constant 0 : i32
    return %c0_i32, %c0_i32_0 : i32, i32
  }
  func.func @transform_9(%arg0: i32) -> (i32, i32) {
    %c0_i32 = arith.constant 0 : i32
    %c0_i32_0 = arith.constant 0 : i32
    %c0_i32_1 = arith.constant 0 : i32
    return %c0_i32, %c0_i32_0 : i32, i32
  }
  func.func @transform_10(%arg0: i32) -> (i32, i32) {
    %c0_i32 = arith.constant 0 : i32
    %c0_i32_0 = arith.constant 0 : i32
    %c0_i32_1 = arith.constant 0 : i32
    return %c0_i32, %c0_i32_0 : i32, i32
  }
  func.func @transform_11(%arg0: i32) -> (i32, i32) {
    %c0_i32 = arith.constant 0 : i32
    %c0_i32_0 = arith.constant 0 : i32
    return %arg0, %c0_i32 : i32, i32
  }
}

</mosaic_0001>

<llo_original>
// kernel: tpu_custom_call.1
$region0: #{tpu_custom_call.1}
  #allocation0 [shape = 'u32[]', space=smem, size = 0x4, offset = 0x4, fixed_abs, tag = 'smem constant byte address 0x4 - core index']
  #allocation1 [shape = 'u32[144,128]{1,0:T(1,128)}', space=vmem, size = 0x12000, scoped, tag = 'internal scratch']
  #allocation2 [shape = 'f32[1,1]{1,0:T(1,128)S(1)}', space=vmem, size = 0x200, scoped, tag = 'scoped memory for tpu_custom_call.1']
  %s0 = inlined_call_operand.hbm [shape: f32[16,64], index: 0, kind: input, shape index: {}]
  %s1 = inlined_call_operand.hbm [shape: f32[16,16], index: 1, kind: input, shape index: {}]
  %s2 = inlined_call_operand.hbm [shape: f32[64,128], index: 2, kind: input, shape index: {}]
  %s3 = inlined_call_operand.vmem [shape: f32[1,128], index: 3, kind: input, shape index: {}]
  %s4 = inlined_call_operand.hbm [shape: f32[128,128], index: 4, kind: input, shape index: {}]
  %s5 = inlined_call_operand.hbm [shape: f32[16,128], index: 5, kind: input, shape index: {}]
  %s6 = inlined_call_operand.vmem [shape: f32[1,128], index: 6, kind: input, shape index: {}]
  %s7 = inlined_call_operand.hbm [shape: f32[128,128], index: 7, kind: input, shape index: {}]
  %s8 = inlined_call_operand.vmem [shape: f32[1,128], index: 8, kind: input, shape index: {}]
  %s9 = inlined_call_operand.vmem [shape: f32[1,128], index: 9, kind: input, shape index: {}]
  %s10 = inlined_call_operand.<no memory space> [shape: f32[1,1], index: 10, kind: input, shape index: {}]
  %s11 = inlined_call_operand.vmem [shape: f32[16,1], index: 11, kind: output, shape index: {}]
  %s12 = sld [smem:[#allocation0]]
  $region78: #{tpu_custom_call.1} parent=0
    _
  %s14 = ssub.s32 1, %s12
  %s15 = scalar_select 0, %s14, %s12
  %v16 = vstv %s10
  %17 = vst [vmem:[#allocation2] sm:$0x1] %v16
  $region1: #{tpu_custom_call.1} parent=0
    #allocation3 [shape = 'u8[8192]{0}', space=vmem, size = 0x2000, scoped, tag = 'input window, operand 0, single buffered']
    #allocation4 [shape = 's32[1]{0}', space=sflag, size = 0x4, scoped, tag = 'scoped memory for tpu_custom_call.1']
    #allocation5 [shape = 'u8[8192]{0}', space=vmem, size = 0x2000, scoped, tag = 'input window, operand 1, single buffered']
    #allocation6 [shape = 's32[1]{0}', space=sflag, size = 0x4, scoped, tag = 'scoped memory for tpu_custom_call.1']
    #allocation7 [shape = 'u8[32768]{0}', space=vmem, size = 0x8000, scoped, tag = 'input window, operand 2, single buffered']
    #allocation8 [shape = 'u8[65536]{0}', space=vmem, size = 0x10000, scoped, tag = 'input window, operand 4, single buffered']
    #allocation9 [shape = 's32[1]{0}', space=sflag, size = 0x4, scoped, tag = 'scoped memory for tpu_custom_call.1']
    #allocation10 [shape = 'u8[8192]{0}', space=vmem, size = 0x2000, scoped, tag = 'input window, operand 5, single buffered']
    #allocation11 [shape = 'u8[65536]{0}', space=vmem, size = 0x10000, scoped, tag = 'input window, operand 7, single buffered']
    #allocation12 [shape = 's32[1]{0}', space=sflag, size = 0x4, scoped, tag = 'scoped memory for tpu_custom_call.1']
    %18 = vsyncpa [#allocation4], 0
    %19 = vsyncpa [#allocation6], 0
    %20 = vsyncpa [#allocation9], 0
    %21 = vsyncpa [#allocation12], 0
    // Predicated region
    $region2: #{tpu_custom_call.1} parent=1 // pred_check
      _
    $region3: #{tpu_custom_call.1} parent=1 // pred_check_branch
      %23 = sbr.rel (0) target = $region5
    $region4: #{tpu_custom_call.1} parent=1 // pred_region
      %s25 = ssub.s32 256, 256
      %26 = vsyncadd [#allocation4], %s25
      %s27 = sshll.u32 [#allocation3], 4
      %s28 = int_to_ptr.vmem [resolvable:$true] %s27
      %33 = dma.hbm_to_vmem [thread:$0]  %s0, 256, %s28, [#allocation4], 128, 128, 8
    $region5: #{tpu_custom_call.1} parent=1 // pred_fallthru
      _
    // Predicated region
    $region6: #{tpu_custom_call.1} parent=1 // pred_check
      _
    $region7: #{tpu_custom_call.1} parent=1 // pred_check_branch
      %35 = sbr.rel (0) target = $region9
    $region8: #{tpu_custom_call.1} parent=1 // pred_region
      %s37 = ssub.s32 256, 256
      %38 = vsyncadd [#allocation6], %s37
      %s39 = sshll.u32 [#allocation5], 4
      %s40 = int_to_ptr.vmem [resolvable:$true] %s39
      %45 = dma.hbm_to_vmem [thread:$0]  %s1, 256, %s40, [#allocation6], 128, 128, 8
    $region9: #{tpu_custom_call.1} parent=1 // pred_fallthru
      _
    // Predicated region
    $region10: #{tpu_custom_call.1} parent=1 // pred_check
      _
    $region11: #{tpu_custom_call.1} parent=1 // pred_check_branch
      %47 = sbr.rel (0) target = $region13
    $region12: #{tpu_custom_call.1} parent=1 // pred_region
      %s49 = ssub.s32 1024, 1024
      %50 = vsyncadd [#allocation6], %s49
      %s51 = sshll.u32 [#allocation7], 4
      %s52 = int_to_ptr.vmem [resolvable:$true] %s51
      %57 = dma.hbm_to_vmem [thread:$0]  %s2, 1024, %s52, [#allocation6], 128, 128, 8
    $region13: #{tpu_custom_call.1} parent=1 // pred_fallthru
      _
    // Predicated region
    $region14: #{tpu_custom_call.1} parent=1 // pred_check
      _
    $region15: #{tpu_custom_call.1} parent=1 // pred_check_branch
      %59 = sbr.rel (0) target = $region17
    $region16: #{tpu_custom_call.1} parent=1 // pred_region
      _
    $region17: #{tpu_custom_call.1} parent=1 // pred_fallthru
      _
    // Predicated region
    $region18: #{tpu_custom_call.1} parent=1 // pred_check
      _
    $region19: #{tpu_custom_call.1} parent=1 // pred_check_branch
      %61 = sbr.rel (0) target = $region21
    $region20: #{tpu_custom_call.1} parent=1 // pred_region
      %s63 = ssub.s32 2048, 2048
      %64 = vsyncadd [#allocation9], %s63
      %s65 = sshll.u32 [#allocation8], 4
      %s66 = int_to_ptr.vmem [resolvable:$true] %s65
      %71 = dma.hbm_to_vmem [thread:$0]  %s4, 2048, %s66, [#allocation9], 128, 128, 8
    $region21: #{tpu_custom_call.1} parent=1 // pred_fallthru
      _
    // Predicated region
    $region22: #{tpu_custom_call.1} parent=1 // pred_check
      _
    $region23: #{tpu_custom_call.1} parent=1 // pred_check_branch
      %73 = sbr.rel (0) target = $region25
    $region24: #{tpu_custom_call.1} parent=1 // pred_region
      %s75 = ssub.s32 256, 256
      %76 = vsyncadd [#allocation9], %s75
      %s77 = sshll.u32 [#allocation10], 4
      %s78 = int_to_ptr.vmem [resolvable:$true] %s77
      %83 = dma.hbm_to_vmem [thread:$0]  %s5, 256, %s78, [#allocation9], 128, 128, 8
    $region25: #{tpu_custom_call.1} parent=1 // pred_fallthru
      _
    // Predicated region
    $region26: #{tpu_custom_call.1} parent=1 // pred_check
      _
    $region27: #{tpu_custom_call.1} parent=1 // pred_check_branch
      %85 = sbr.rel (0) target = $region29
    $region28: #{tpu_custom_call.1} parent=1 // pred_region
      _
    $region29: #{tpu_custom_call.1} parent=1 // pred_fallthru
      _
    // Predicated region
    $region30: #{tpu_custom_call.1} parent=1 // pred_check
      _
    $region31: #{tpu_custom_call.1} parent=1 // pred_check_branch
      %87 = sbr.rel (0) target = $region33
    $region32: #{tpu_custom_call.1} parent=1 // pred_region
      %s89 = ssub.s32 2048, 2048
      %90 = vsyncadd [#allocation12], %s89
      %s91 = sshll.u32 [#allocation11], 4
      %s92 = int_to_ptr.vmem [resolvable:$true] %s91
      %97 = dma.hbm_to_vmem [thread:$0]  %s7, 2048, %s92, [#allocation12], 128, 128, 8
    $region33: #{tpu_custom_call.1} parent=1 // pred_fallthru
      _
    // Predicated region
    $region34: #{tpu_custom_call.1} parent=1 // pred_check
      _
    $region35: #{tpu_custom_call.1} parent=1 // pred_check_branch
      %99 = sbr.rel (0) target = $region37
    $region36: #{tpu_custom_call.1} parent=1 // pred_region
      _
    $region37: #{tpu_custom_call.1} parent=1 // pred_fallthru
      _
    // Predicated region
    $region38: #{tpu_custom_call.1} parent=1 // pred_check
      _
    $region39: #{tpu_custom_call.1} parent=1 // pred_check_branch
      %101 = sbr.rel (0) target = $region41
    $region40: #{tpu_custom_call.1} parent=1 // pred_region
      _
    $region41: #{tpu_custom_call.1} parent=1 // pred_fallthru
      _
    // Predicated region
    $region42: #{tpu_custom_call.1} parent=1 // pred_check
      _
    $region43: #{tpu_custom_call.1} parent=1 // pred_check_branch
      %103 = sbr.rel (0) target = $region45
    $region44: #{tpu_custom_call.1} parent=1 // pred_region
      _
    $region45: #{tpu_custom_call.1} parent=1 // pred_fallthru
      _
    // Predicated region
    $region46: #{tpu_custom_call.1} parent=1 // pred_check
      _
    $region47: #{tpu_custom_call.1} parent=1 // pred_check_branch
      %105 = sbr.rel (0) target = $region49
    $region48: #{tpu_custom_call.1} parent=1 // pred_region
      %106 = dma.done [#allocation4], 256
    $region49: #{tpu_custom_call.1} parent=1 // pred_fallthru
      _
    // Predicated region
    $region50: #{tpu_custom_call.1} parent=1 // pred_check
      _
    $region51: #{tpu_custom_call.1} parent=1 // pred_check_branch
      %108 = sbr.rel (0) target = $region53
    $region52: #{tpu_custom_call.1} parent=1 // pred_region
      %109 = dma.done [#allocation6], 256
    $region53: #{tpu_custom_call.1} parent=1 // pred_fallthru
      _
    // Predicated region
    $region54: #{tpu_custom_call.1} parent=1 // pred_check
      _
    $region55: #{tpu_custom_call.1} parent=1 // pred_check_branch
      %111 = sbr.rel (0) target = $region57
    $region56: #{tpu_custom_call.1} parent=1 // pred_region
      %112 = dma.done [#allocation6], 1024
    $region57: #{tpu_custom_call.1} parent=1 // pred_fallthru
      _
    // Predicated region
    $region58: #{tpu_custom_call.1} parent=1 // pred_check
      _
    $region59: #{tpu_custom_call.1} parent=1 // pred_check_branch
      %114 = sbr.rel (0) target = $region61
    $region60: #{tpu_custom_call.1} parent=1 // pred_region
      %115 = dma.done [#allocation9], 2048
    $region61: #{tpu_custom_call.1} parent=1 // pred_fallthru
      _
    // Predicated region
    $region62: #{tpu_custom_call.1} parent=1 // pred_check
      _
    $region63: #{tpu_custom_call.1} parent=1 // pred_check_branch
      %117 = sbr.rel (0) target = $region65
    $region64: #{tpu_custom_call.1} parent=1 // pred_region
      %118 = dma.done [#allocation9], 256
    $region65: #{tpu_custom_call.1} parent=1 // pred_fallthru
      _
    // Predicated region
    $region66: #{tpu_custom_call.1} parent=1 // pred_check
      _
    $region67: #{tpu_custom_call.1} parent=1 // pred_check_branch
      %120 = sbr.rel (0) target = $region69
    $region68: #{tpu_custom_call.1} parent=1 // pred_region
      %121 = dma.done [#allocation12], 2048
    $region69: #{tpu_custom_call.1} parent=1 // pred_fallthru
      _
    %v122 = vld [vmem:[#allocation3] sm:$0xff]
    %v123 = vld [vmem:[#allocation3 + $0x8] sm:$0xff]
    %v124 = vld [vmem:[#allocation5] sm:$0xff]
    %v125 = vld [vmem:[#allocation5 + $0x8] sm:$0xff]
    %v126 = vld [vmem:[#allocation7] sm:$0xff]
    %v127 = vld [vmem:[#allocation7 + $0x8] sm:$0xff]
    %v128 = vld [vmem:[#allocation7 + $0x10] sm:$0xff]
    %v129 = vld [vmem:[#allocation7 + $0x18] sm:$0xff]
    %v130 = vld [vmem:[#allocation7 + $0x20] sm:$0xff]
    %v131 = vld [vmem:[#allocation7 + $0x28] sm:$0xff]
    %v132 = vld [vmem:[#allocation7 + $0x30] sm:$0xff]
    %v133 = vld [vmem:[#allocation7 + $0x38] sm:$0xff]
    %v134 = vld [vmem:[%s3] sm:$0x1]
    %v136 = vlaneseq
    %v137 = vshrl.u32 %v136, 7
    %v138 = vsub.s32 0, %v137
    %v139 = vrot.slane %v134, %v138
    %vm141 = vcmask 523264
    %v143 = vsel %vm141, %v122, 0
    %v146 = vsel %vm141, %v123, 0
    %148 = vmatprep.subr.mxu0 0.0
    %149 = vmatpush1.msra.mxu0 0.0
    %150 = vmatprep.subr.mxu0 0.0
    %151 = vmatpush1.msra.mxu0 0.0
    %152 = vmatprep.subr.mxu0 0.0
    %153 = vmatpush1.msra.mxu0 0.0
    %154 = vmatprep.subr.mxu0 0.0
    %155 = vmatpush1.msra.mxu0 0.0
    %156 = vmatprep.subr.mxu0 0.0
    %157 = vmatpush1.msra.mxu0 0.0
    %158 = vmatprep.subr.mxu0 0.0
    %159 = vmatpush1.msra.mxu0 0.0
    %160 = vmatprep.subr.mxu0 0.0
    %161 = vmatpush1.msra.mxu0 0.0
    %162 = vmatprep.subr.mxu0 0.0
    %163 = vmatpush1.msra.mxu0 0.0
    %164 = vmatprep.subr.mxu0 0.0
    %165 = vmatpush1.msra.mxu0 %v133
    %166 = vmatprep.subr.mxu0 0.0
    %167 = vmatpush1.msra.mxu0 %v132
    %168 = vmatprep.subr.mxu0 0.0
    %169 = vmatpush1.msra.mxu0 %v131
    %170 = vmatprep.subr.mxu0 0.0
    %171 = vmatpush1.msra.mxu0 %v130
    %172 = vmatprep.subr.mxu0 0.0
    %173 = vmatpush1.msra.mxu0 %v129
    %174 = vmatprep.subr.mxu0 0.0
    %175 = vmatpush1.msra.mxu0 %v128
    %176 = vmatprep.subr.mxu0 0.0
    %177 = vmatpush1.msra.mxu0 %v127
    %178 = vmatprep.subr.mxu0 0.0
    %179 = vmatpush1.msra.mxu0 %v126
    %180 = vmatprep.subr.mxu0 0.0
    %181 = vmatpush2.msra.mxu0 0.0
    %182 = vmatprep.subr.mxu0 0.0
    %183 = vmatpush2.msra.mxu0 0.0
    %184 = vmatprep.subr.mxu0 0.0
    %185 = vmatpush2.msra.mxu0 0.0
    %186 = vmatprep.subr.mxu0 0.0
    %187 = vmatpush2.msra.mxu0 0.0
    %188 = vmatprep.subr.mxu0 0.0
    %189 = vmatpush2.msra.mxu0 0.0
    %190 = vmatprep.subr.mxu0 0.0
    %191 = vmatpush2.msra.mxu0 0.0
    %192 = vmatprep.subr.mxu0 0.0
    %193 = vmatpush2.msra.mxu0 0.0
    %194 = vmatprep.subr.mxu0 0.0
    %195 = vmatpush2.msra.mxu0 0.0
    %196 = vmatprep.subr.mxu0 0.0
    %197 = vmatpush2.msra.mxu0 0.0
    %198 = vmatprep.subr.mxu0 0.0
    %199 = vmatpush2.msra.mxu0 0.0
    %200 = vmatprep.subr.mxu0 0.0
    %201 = vmatpush2.msra.mxu0 0.0
    %202 = vmatprep.subr.mxu0 0.0
    %203 = vmatpush2.msra.mxu0 0.0
    %204 = vmatprep.subr.mxu0 0.0
    %205 = vmatpush2.msra.mxu0 0.0
    %206 = vmatprep.subr.mxu0 0.0
    %207 = vmatpush2.msra.mxu0 0.0
    %208 = vmatprep.subr.mxu0 0.0
    %209 = vmatpush2.msra.mxu0 0.0
    %210 = vmatprep.subr.mxu0 0.0
    %211 = vmatpush2.msra.mxu0 0.0
    %212 = vmatprep.mubr.f32.mxu0 0.0
    %213 = vmatmul.mubr.f32.gmra.mxu0 %v143
    %v214 = vpop.f32.mrf.mxu0
    %v215 = vadd.f32 %v139, %v214
    %v216 = vpop.f32.mrf.mxu0
    %217 = vmatprep.mubr.f32.mxu0 0.0
    %218 = vmatmul.mubr.f32.gmra.mxu0 %v146
    %v219 = vpop.f32.mrf.mxu0
    %v220 = vadd.f32 %v139, %v219
    %v221 = vpop.f32.mrf.mxu0
    %222 = vdwg.mxu0
    %v223 = vmul.f32 %v215, 0.2
    %v224 = vmul.f32 %v220, 0.2
    %v225 = vmax.f32 %v215, %v223
    %v226 = vmax.f32 %v220, %v224
    %v227 = vld [vmem:[#allocation8] sm:$0xff]
    %v228 = vld [vmem:[#allocation8 + $0x8] sm:$0xff]
    %v229 = vld [vmem:[#allocation8 + $0x10] sm:$0xff]
    %v230 = vld [vmem:[#allocation8 + $0x18] sm:$0xff]
    %v231 = vld [vmem:[#allocation8 + $0x20] sm:$0xff]
    %v232 = vld [vmem:[#allocation8 + $0x28] sm:$0xff]
    %v233 = vld [vmem:[#allocation8 + $0x30] sm:$0xff]
    %v234 = vld [vmem:[#allocation8 + $0x38] sm:$0xff]
    %v235 = vld [vmem:[#allocation8 + $0x40] sm:$0xff]
    %v236 = vld [vmem:[#allocation8 + $0x48] sm:$0xff]
    %v237 = vld [vmem:[#allocation8 + $0x50] sm:$0xff]
    %v238 = vld [vmem:[#allocation8 + $0x58] sm:$0xff]
    %v239 = vld [vmem:[#allocation8 + $0x60] sm:$0xff]
    %v240 = vld [vmem:[#allocation8 + $0x68] sm:$0xff]
    %v241 = vld [vmem:[#allocation8 + $0x70] sm:$0xff]
    %v242 = vld [vmem:[#allocation8 + $0x78] sm:$0xff]
    %v243 = vld [vmem:[#allocation10] sm:$0xff]
    %v244 = vld [vmem:[#allocation10 + $0x8] sm:$0xff]
    %vm245 = vcmask 130048
    %v247 = vsel %vm245, %v124, 0
    %v250 = vsel %vm245, %v125, 0
    %252 = vmatprep.subr.mxu0 0.0
    %253 = vmatpush1.msra.mxu0 0.0
    %254 = vmatprep.subr.mxu0 0.0
    %255 = vmatpush1.msra.mxu0 0.0
    %256 = vmatprep.subr.mxu0 0.0
    %257 = vmatpush1.msra.mxu0 0.0
    %258 = vmatprep.subr.mxu0 0.0
    %259 = vmatpush1.msra.mxu0 0.0
    %260 = vmatprep.subr.mxu0 0.0
    %261 = vmatpush1.msra.mxu0 0.0
    %262 = vmatprep.subr.mxu0 0.0
    %263 = vmatpush1.msra.mxu0 0.0
    %264 = vmatprep.subr.mxu0 0.0
    %265 = vmatpush1.msra.mxu0 0.0
    %266 = vmatprep.subr.mxu0 0.0
    %267 = vmatpush1.msra.mxu0 0.0
    %268 = vmatprep.subr.mxu0 0.0
    %269 = vmatpush1.msra.mxu0 0.0
    %270 = vmatprep.subr.mxu0 0.0
    %271 = vmatpush1.msra.mxu0 0.0
    %272 = vmatprep.subr.mxu0 0.0
    %273 = vmatpush1.msra.mxu0 0.0
    %274 = vmatprep.subr.mxu0 0.0
    %275 = vmatpush1.msra.mxu0 0.0
    %276 = vmatprep.subr.mxu0 0.0
    %277 = vmatpush1.msra.mxu0 0.0
    %278 = vmatprep.subr.mxu0 0.0
    %279 = vmatpush1.msra.mxu0 0.0
    %280 = vmatprep.subr.mxu0 0.0
    %281 = vmatpush1.msra.mxu0 %v244
    %282 = vmatprep.subr.mxu0 0.0
    %283 = vmatpush1.msra.mxu0 %v243
    %284 = vmatprep.subr.mxu0 0.0
    %285 = vmatpush2.msra.mxu0 0.0
    %286 = vmatprep.subr.mxu0 0.0
    %287 = vmatpush2.msra.mxu0 0.0
    %288 = vmatprep.subr.mxu0 0.0
    %289 = vmatpush2.msra.mxu0 0.0
    %290 = vmatprep.subr.mxu0 0.0
    %291 = vmatpush2.msra.mxu0 0.0
    %292 = vmatprep.subr.mxu0 0.0
    %293 = vmatpush2.msra.mxu0 0.0
    %294 = vmatprep.subr.mxu0 0.0
    %295 = vmatpush2.msra.mxu0 0.0
    %296 = vmatprep.subr.mxu0 0.0
    %297 = vmatpush2.msra.mxu0 0.0
    %298 = vmatprep.subr.mxu0 0.0
    %299 = vmatpush2.msra.mxu0 0.0
    %300 = vmatprep.subr.mxu0 0.0
    %301 = vmatpush2.msra.mxu0 0.0
    %302 = vmatprep.subr.mxu0 0.0
    %303 = vmatpush2.msra.mxu0 0.0
    %304 = vmatprep.subr.mxu0 0.0
    %305 = vmatpush2.msra.mxu0 0.0
    %306 = vmatprep.subr.mxu0 0.0
    %307 = vmatpush2.msra.mxu0 0.0
    %308 = vmatprep.subr.mxu0 0.0
    %309 = vmatpush2.msra.mxu0 0.0
    %310 = vmatprep.subr.mxu0 0.0
    %311 = vmatpush2.msra.mxu0 0.0
    %312 = vmatprep.subr.mxu0 0.0
    %313 = vmatpush2.msra.mxu0 0.0
    %314 = vmatprep.subr.mxu0 0.0
    %315 = vmatpush2.msra.mxu0 0.0
    %316 = vmatprep.mubr.f32.mxu0 0.0
    %317 = vmatmul.mubr.f32.gmra.mxu0 %v247
    %v318 = vpop.f32.mrf.mxu0
    %v319 = vadd.f32 0.0, %v318
    %v320 = vpop.f32.mrf.mxu0
    %321 = vmatprep.mubr.f32.mxu0 0.0
    %322 = vmatmul.mubr.f32.gmra.mxu0 %v250
    %v323 = vpop.f32.mrf.mxu0
    %v324 = vadd.f32 0.0, %v323
    %v325 = vpop.f32.mrf.mxu0
    %326 = vdwg.mxu0
    %327 = vmatprep.subr.mxu0 0.0
    %328 = vmatpush1.msra.mxu0 %v242
    %329 = vmatprep.subr.mxu0 0.0
    %330 = vmatpush1.msra.mxu0 %v241
    %331 = vmatprep.subr.mxu0 0.0
    %332 = vmatpush1.msra.mxu0 %v240
    %333 = vmatprep.subr.mxu0 0.0
    %334 = vmatpush1.msra.mxu0 %v239
    %335 = vmatprep.subr.mxu0 0.0
    %336 = vmatpush1.msra.mxu0 %v238
    %337 = vmatprep.subr.mxu0 0.0
    %338 = vmatpush1.msra.mxu0 %v237
    %339 = vmatprep.subr.mxu0 0.0
    %340 = vmatpush1.msra.mxu0 %v236
    %341 = vmatprep.subr.mxu0 0.0
    %342 = vmatpush1.msra.mxu0 %v235
    %343 = vmatprep.subr.mxu0 0.0
    %344 = vmatpush1.msra.mxu0 %v234
    %345 = vmatprep.subr.mxu0 0.0
    %346 = vmatpush1.msra.mxu0 %v233
    %347 = vmatprep.subr.mxu0 0.0
    %348 = vmatpush1.msra.mxu0 %v232
    %349 = vmatprep.subr.mxu0 0.0
    %350 = vmatpush1.msra.mxu0 %v231
    %351 = vmatprep.subr.mxu0 0.0
    %352 = vmatpush1.msra.mxu0 %v230
    %353 = vmatprep.subr.mxu0 0.0
    %354 = vmatpush1.msra.mxu0 %v229
    %355 = vmatprep.subr.mxu0 0.0
    %356 = vmatpush1.msra.mxu0 %v228
    %357 = vmatprep.subr.mxu0 0.0
    %358 = vmatpush1.msra.mxu0 %v227
    %359 = vmatprep.subr.mxu0 0.0
    %360 = vmatpush2.msra.mxu0 0.0
    %361 = vmatprep.subr.mxu0 0.0
    %362 = vmatpush2.msra.mxu0 0.0
    %363 = vmatprep.subr.mxu0 0.0
    %364 = vmatpush2.msra.mxu0 0.0
    %365 = vmatprep.subr.mxu0 0.0
    %366 = vmatpush2.msra.mxu0 0.0
    %367 = vmatprep.subr.mxu0 0.0
    %368 = vmatpush2.msra.mxu0 0.0
    %369 = vmatprep.subr.mxu0 0.0
    %370 = vmatpush2.msra.mxu0 0.0
    %371 = vmatprep.subr.mxu0 0.0
    %372 = vmatpush2.msra.mxu0 0.0
    %373 = vmatprep.subr.mxu0 0.0
    %374 = vmatpush2.msra.mxu0 0.0
    %375 = vmatprep.subr.mxu0 0.0
    %376 = vmatpush2.msra.mxu0 0.0
    %377 = vmatprep.subr.mxu0 0.0
    %378 = vmatpush2.msra.mxu0 0.0
    %379 = vmatprep.subr.mxu0 0.0
    %380 = vmatpush2.msra.mxu0 0.0
    %381 = vmatprep.subr.mxu0 0.0
    %382 = vmatpush2.msra.mxu0 0.0
    %383 = vmatprep.subr.mxu0 0.0
    %384 = vmatpush2.msra.mxu0 0.0
    %385 = vmatprep.subr.mxu0 0.0
    %386 = vmatpush2.msra.mxu0 0.0
    %387 = vmatprep.subr.mxu0 0.0
    %388 = vmatpush2.msra.mxu0 0.0
    %389 = vmatprep.subr.mxu0 0.0
    %390 = vmatpush2.msra.mxu0 0.0
    %391 = vmatprep.mubr.f32.mxu0 0.0
    %392 = vmatmul.mubr.f32.gmra.mxu0 %v225
    %v393 = vpop.f32.mrf.mxu0
    %v394 = vadd.f32 %v319, %v393
    %v395 = vpop.f32.mrf.mxu0
    %396 = vmatprep.mubr.f32.mxu0 0.0
    %397 = vmatmul.mubr.f32.gmra.mxu0 %v226
    %v398 = vpop.f32.mrf.mxu0
    %v399 = vadd.f32 %v324, %v398
    %v400 = vpop.f32.mrf.mxu0
    %401 = vdwg.mxu0
    %v402 = vld [vmem:[%s6] sm:$0x1]
    %v404 = vlaneseq
    %v405 = vshrl.u32 %v404, 7
    %v406 = vsub.s32 0, %v405
    %v407 = vrot.slane %v402, %v406
    %v409 = vadd.f32 %v394, %v407
    %v410 = vadd.f32 %v399, %v407
    %v411 = vmul.f32 %v409, 0.2
    %v412 = vmul.f32 %v410, 0.2
    %v413 = vmax.f32 %v409, %v411
    %v414 = vmax.f32 %v410, %v412
    %v415 = vld [vmem:[#allocation11] sm:$0xff]
    %v416 = vld [vmem:[#allocation11 + $0x8] sm:$0xff]
    %v417 = vld [vmem:[#allocation11 + $0x10] sm:$0xff]
    %v418 = vld [vmem:[#allocation11 + $0x18] sm:$0xff]
    %v419 = vld [vmem:[#allocation11 + $0x20] sm:$0xff]
    %v420 = vld [vmem:[#allocation11 + $0x28] sm:$0xff]
    %v421 = vld [vmem:[#allocation11 + $0x30] sm:$0xff]
    %v422 = vld [vmem:[#allocation11 + $0x38] sm:$0xff]
    %v423 = vld [vmem:[#allocation11 + $0x40] sm:$0xff]
    %v424 = vld [vmem:[#allocation11 + $0x48] sm:$0xff]
    %v425 = vld [vmem:[#allocation11 + $0x50] sm:$0xff]
    %v426 = vld [vmem:[#allocation11 + $0x58] sm:$0xff]
    %v427 = vld [vmem:[#allocation11 + $0x60] sm:$0xff]
    %v428 = vld [vmem:[#allocation11 + $0x68] sm:$0xff]
    %v429 = vld [vmem:[#allocation11 + $0x70] sm:$0xff]
    %v430 = vld [vmem:[#allocation11 + $0x78] sm:$0xff]
    %v431 = vld [vmem:[%s8] sm:$0x1]
    %v433 = vlaneseq
    %v434 = vshrl.u32 %v433, 7
    %v435 = vsub.s32 0, %v434
    %v436 = vrot.slane %v431, %v435
    %438 = vmatprep.subr.mxu0 0.0
    %439 = vmatpush1.msra.mxu0 %v430
    %440 = vmatprep.subr.mxu0 0.0
    %441 = vmatpush1.msra.mxu0 %v429
    %442 = vmatprep.subr.mxu0 0.0
    %443 = vmatpush1.msra.mxu0 %v428
    %444 = vmatprep.subr.mxu0 0.0
    %445 = vmatpush1.msra.mxu0 %v427
    %446 = vmatprep.subr.mxu0 0.0
    %447 = vmatpush1.msra.mxu0 %v426
    %448 = vmatprep.subr.mxu0 0.0
    %449 = vmatpush1.msra.mxu0 %v425
    %450 = vmatprep.subr.mxu0 0.0
    %451 = vmatpush1.msra.mxu0 %v424
    %452 = vmatprep.subr.mxu0 0.0
    %453 = vmatpush1.msra.mxu0 %v423
    %454 = vmatprep.subr.mxu0 0.0
    %455 = vmatpush1.msra.mxu0 %v422
    %456 = vmatprep.subr.mxu0 0.0
    %457 = vmatpush1.msra.mxu0 %v421
    %458 = vmatprep.subr.mxu0 0.0
    %459 = vmatpush1.msra.mxu0 %v420
    %460 = vmatprep.subr.mxu0 0.0
    %461 = vmatpush1.msra.mxu0 %v419
    %462 = vmatprep.subr.mxu0 0.0
    %463 = vmatpush1.msra.mxu0 %v418
    %464 = vmatprep.subr.mxu0 0.0
    %465 = vmatpush1.msra.mxu0 %v417
    %466 = vmatprep.subr.mxu0 0.0
    %467 = vmatpush1.msra.mxu0 %v416
    %468 = vmatprep.subr.mxu0 0.0
    %469 = vmatpush1.msra.mxu0 %v415
    %470 = vmatprep.subr.mxu0 0.0
    %471 = vmatpush2.msra.mxu0 0.0
    %472 = vmatprep.subr.mxu0 0.0
    %473 = vmatpush2.msra.mxu0 0.0
    %474 = vmatprep.subr.mxu0 0.0
    %475 = vmatpush2.msra.mxu0 0.0
    %476 = vmatprep.subr.mxu0 0.0
    %477 = vmatpush2.msra.mxu0 0.0
    %478 = vmatprep.subr.mxu0 0.0
    %479 = vmatpush2.msra.mxu0 0.0
    %480 = vmatprep.subr.mxu0 0.0
    %481 = vmatpush2.msra.mxu0 0.0
    %482 = vmatprep.subr.mxu0 0.0
    %483 = vmatpush2.msra.mxu0 0.0
    %484 = vmatprep.subr.mxu0 0.0
    %485 = vmatpush2.msra.mxu0 0.0
    %486 = vmatprep.subr.mxu0 0.0
    %487 = vmatpush2.msra.mxu0 0.0
    %488 = vmatprep.subr.mxu0 0.0
    %489 = vmatpush2.msra.mxu0 0.0
    %490 = vmatprep.subr.mxu0 0.0
    %491 = vmatpush2.msra.mxu0 0.0
    %492 = vmatprep.subr.mxu0 0.0
    %493 = vmatpush2.msra.mxu0 0.0
    %494 = vmatprep.subr.mxu0 0.0
    %495 = vmatpush2.msra.mxu0 0.0
    %496 = vmatprep.subr.mxu0 0.0
    %497 = vmatpush2.msra.mxu0 0.0
    %498 = vmatprep.subr.mxu0 0.0
    %499 = vmatpush2.msra.mxu0 0.0
    %500 = vmatprep.subr.mxu0 0.0
    %501 = vmatpush2.msra.mxu0 0.0
    %502 = vmatprep.mubr.f32.mxu0 0.0
    %503 = vmatmul.mubr.f32.gmra.mxu0 %v413
    %v504 = vpop.f32.mrf.mxu0
    %v505 = vadd.f32 %v436, %v504
    %v506 = vpop.f32.mrf.mxu0
    %507 = vmatprep.mubr.f32.mxu0 0.0
    %508 = vmatmul.mubr.f32.gmra.mxu0 %v414
    %v509 = vpop.f32.mrf.mxu0
    %v510 = vadd.f32 %v436, %v509
    %v511 = vpop.f32.mrf.mxu0
    %512 = vdwg.mxu0
    %v513 = vmul.f32 %v505, 0.2
    %v514 = vmul.f32 %v510, 0.2
    %v515 = vmax.f32 %v505, %v513
    %v516 = vmax.f32 %v510, %v514
    %v517 = vld [vmem:[%s9] sm:$0x1]
    %v519 = vlaneseq
    %v520 = vshrl.u32 %v519, 7
    %v521 = vsub.s32 0, %v520
    %v522 = vrot.slane %v517, %v521
    %v524 = vmul.f32 %v515, %v522
    %v525 = vmul.f32 %v516, %v522
    %526 = vadd.xlane.f32.xlu0 %v524
    %v527 = vpop.xlane.xlu0 %526
    %528 = vadd.xlane.f32.xlu0 %v525
    %v529 = vpop.xlane.xlu0 %528
    %v530 = vld [vmem:[#allocation2] sm:$0x1]
    %v532 = vlaneseq
    %v533 = vshrl.u32 %v532, 7
    %v534 = vsub.s32 0, %v533
    %v535 = vrot.slane %v530, %v534
    %v537 = vadd.f32 %v527, %v535
    %v538 = vadd.f32 %v529, %v535
    %v539 = vmul.f32 %v537, 0.5
    %v540 = vmul.f32 %v538, 0.5
    %v541 = vtanh.pop %v539
    %v542 = vtanh.pop %v540
    %v543 = vadd.f32 %v541, 1.0
    %v544 = vadd.f32 %v542, 1.0
    %v545 = vmul.f32 %v543, 0.5
    %v546 = vmul.f32 %v544, 0.5
    %vm547 = vcmask 7168
    %548 = vst.msk [vmem:[%s11] sm:$0xff] %vm547, %v545
    %549 = vst.msk [vmem:[%s11 + $0x8] sm:$0xff] %vm547, %v546
    // Predicated region
    $region70: #{tpu_custom_call.1} parent=1 // pred_check
      _
    $region71: #{tpu_custom_call.1} parent=1 // pred_check_branch
      %551 = sbr.rel (0) target = $region73
    $region72: #{tpu_custom_call.1} parent=1 // pred_region
      _
    $region73: #{tpu_custom_call.1} parent=1 // pred_fallthru
      _
    // Predicated region
    $region74: #{tpu_custom_call.1} parent=1 // pred_check
      _
    $region75: #{tpu_custom_call.1} parent=1 // pred_check_branch
      %553 = sbr.rel (0) target = $region77
    $region76: #{tpu_custom_call.1} parent=1 // pred_region
      _
    $region77: #{tpu_custom_call.1} parent=1 // pred_fallthru
      _
    %554 = vsyncpa [#allocation4], 1
    %555 = vsyncpa [#allocation6], 1
    %556 = vsyncpa [#allocation9], 1
    %557 = vsyncpa [#allocation12], 1

</llo_original>
